<compile_context>
chip_gen: v7x
topology: tpu7x:2x2x1
jax: 0.10.0
libtpu: 0.0.40
codegen_flags: <defaults>
</compile_context>

<pallas_src>
import functools

import jax
import jax.numpy as jnp
from jax.experimental import pallas as pl
from jax.experimental.pallas import tpu as pltpu


# --------------------------------------------------------------------------
# Per-chip VMEM budgets
# --------------------------------------------------------------------------
def _vmem_budgets():
    """Block-sizing budgets + scoped VMEM limit, selected per chip generation."""
    vmem = None
    try:
        vmem = getattr(pltpu.get_tpu_info(), "vmem_capacity_bytes", None)
    except Exception:
        vmem = None
    if vmem is not None and vmem >= 100 * (1 << 20):
        # 128 MiB VMEM chips (v5e / v6e): larger tiles amortize grid overhead.
        return {"block": 32 << 20, "fused": 64 << 20, "limit": 96 << 20}
    # 64 MiB VMEM (v7x) or unknown chip: conservative.
    return {"block": 16 << 20, "fused": 32 << 20, "limit": 48 << 20}


def _pick_hw_tile(hw, bytes_per_lane, budget):
    """Lane (H*W) tile: the full dim if it fits, else the largest multiple of
    128 under the budget (preferring an exact divisor near the cap so the tail
    mask can be skipped)."""
    max_lanes = max(budget // max(bytes_per_lane, 1), 128)
    if hw <= max_lanes:
        return hw                        # full lane dim: always legal, no mask
    cap = (max_lanes // 128) * 128
    t = cap
    while t >= max(cap // 2, 128):       # only accept divisors close to the cap
        if hw % t == 0:
            return t
        t -= 128
    return cap                           # cdiv tiling; tail handled by masking


def _pick_fused_ctile(B, Ctot, HW, in_isz, out_isz, budget):
    """Largest channel tile whose (B, tc, HW) slab fits the fused-path budget
    (double-buffered in/out plus headroom for f32 temporaries).  None => use
    the two-pass fallback."""
    bytes_per_chan = B * HW * (2 * in_isz + 2 * out_isz + 4 * 4)
    candidates = [Ctot] + [t for t in (512, 256, 128, 64, 32, 16, 8) if t < Ctot]
    for tc in candidates:
        if (tc == Ctot or tc % 8 == 0) and tc * bytes_per_chan <= budget:
            return tc
    return None


# --------------------------------------------------------------------------
# Kernels
# --------------------------------------------------------------------------
def _fused_bn_kernel(x_ref, w_ref, b_ref, o_ref, mean_ref, var_ref, *, eps, inv_n):
    """Single-read path: stats + normalize for one channel block.

    x_ref: (B, tc, HW); w_ref/b_ref/mean_ref/var_ref: (tc, 1); o_ref: (B, tc, HW).
    Uses centered (biased) variance since the slab is resident in VMEM.
    """
    x = x_ref[...].astype(jnp.float32)                                # (B, tc, HW)
    s = jnp.sum(jnp.sum(x, axis=0), axis=1, keepdims=True)            # (tc, 1)
    mean = s * inv_n
    d = x - mean[None]                                                # (B, tc, HW)
    var = jnp.sum(jnp.sum(d * d, axis=0), axis=1, keepdims=True) * inv_n
    invstd = jax.lax.rsqrt(var + eps)                                 # EUP slot
    scale = invstd * w_ref[...]                                       # (tc, 1)
    o_ref[...] = (d * scale[None] + b_ref[...][None]).astype(o_ref.dtype)
    mean_ref[...] = mean
    var_ref[...] = var


def _partial_stats_kernel(x_ref, sum_ref, sq_ref, *, nhw, red_steps,
                          r_per_split, hw, thw, need_mask):
    """Pass 1 (fallback): per-channel partial sum / sum-of-squares.

    Grid = (channel_block [parallel], split [parallel], reduction [arbitrary]).
    The outputs (indexed by channel block + split only) are resident
    accumulators across the reduction axis.
    """
    r = pl.program_id(2)

    @pl.when(r == 0)
    def _():
        sum_ref[...] = jnp.zeros_like(sum_ref)
        sq_ref[...] = jnp.zeros_like(sq_ref)

    x = x_ref[...].astype(jnp.float32)                                # (1, tc, thw)
    if need_mask:
        # Mask (a) the ragged lane tail and (b) the overrun steps of an odd
        # reduction count split 2 ways (index map clamps; mask zeroes).
        s_idx = pl.program_id(1)
        g = s_idx * r_per_split + r
        j = g % nhw
        valid = jnp.where(g < red_steps, hw - j * thw, 0)
        lane = jax.lax.broadcasted_iota(jnp.int32, x.shape, 2)
        x = jnp.where(lane < valid, x, 0.0)

    sum_ref[...] += jnp.sum(x, axis=2, keepdims=True)                 # (1, tc, 1)
    sq_ref[...] += jnp.sum(x * x, axis=2, keepdims=True)


def _normalize_kernel(x_ref, sum_ref, sq_ref, w_ref, b_ref, o_ref, *, eps, inv_n):
    """Pass 2 (fallback): finalize stats in-kernel, then y = x*scale + shift.

    x_ref: (1, tc, thw); sum_ref/sq_ref: (nsplit, tc, 1); w_ref/b_ref: (tc, 1).
    Finalization is O(tc) (EUP rsqrt) and hidden under the DMA of the x tile.
    """
    s = jnp.sum(sum_ref[...], axis=0)                                 # (tc, 1)
    sq = jnp.sum(sq_ref[...], axis=0)                                 # (tc, 1)
    mean = s * inv_n
    var = jnp.maximum(sq * inv_n - mean * mean, 0.0)
    invstd = jax.lax.rsqrt(var + eps)
    scale = invstd * w_ref[...]
    shift = b_ref[...] - mean * scale
    x = x_ref[...].astype(jnp.float32)                                # (1, tc, thw)
    o_ref[...] = (x * scale[None] + shift[None]).astype(o_ref.dtype)


# --------------------------------------------------------------------------
# Wrapper
# --------------------------------------------------------------------------
def param_batch_norm_2d(x_nchw, weight, bias, *, n_groups, num_features,
                        eps=1e-5, keep_group_dim=True,
                        force_two_pass=False, _force_fused_ctile=None):
    """ParamBatchNorm forward (BatchNorm2d flavor), training-mode statistics.

    Args:
      x_nchw: [B, n_groups*num_features, H, W]
      weight: [n_groups, num_features]  (flattened internally, like _set_weight)
      bias:   [n_groups, num_features]  (flattened internally, like _set_bias)

    Returns:
      y:          [B, n_groups, num_features, H, W] if keep_group_dim and
                  n_groups > 1, else [B, n_groups*num_features, H, W]
      batch_mean: [n_groups*num_features]
      batch_var:  [n_groups*num_features]  (biased)
    """
    B, Ctot, H, W = x_nchw.shape
    assert Ctot == n_groups * num_features
    HW = H * W

    # Native NCHW view: channels on sublanes, H*W on lanes.  Pure reshapes only.
    x3 = x_nchw.reshape(B, Ctot, HW)
    w2 = weight.reshape(Ctot, 1).astype(jnp.float32)
    b2 = bias.reshape(Ctot, 1).astype(jnp.float32)

    in_isz = x3.dtype.itemsize
    out_isz = in_isz
    budgets = _vmem_budgets()
    inv_n = 1.0 / float(B * HW)

    fused_tc = None
    if not force_two_pass:
        fused_tc = _pick_fused_ctile(B, Ctot, HW, in_isz, out_isz, budgets["fused"])
        if _force_fused_ctile is not None:
            fused_tc = _force_fused_ctile

    if fused_tc is not None:
        # ---------------- Fused single-read path (2N HBM bytes) --------------
        cblocks = pl.cdiv(Ctot, fused_tc)
        kernel = functools.partial(_fused_bn_kernel, eps=eps, inv_n=inv_n)
        y3, mean2, var2 = pl.pallas_call(
            kernel,
            out_shape=(jax.ShapeDtypeStruct((B, Ctot, HW), x3.dtype),
                       jax.ShapeDtypeStruct((Ctot, 1), jnp.float32),
                       jax.ShapeDtypeStruct((Ctot, 1), jnp.float32)),
            grid_spec=pltpu.PrefetchScalarGridSpec(
                num_scalar_prefetch=0,
                grid=(cblocks,),
                in_specs=[pl.BlockSpec((B, fused_tc, HW), lambda c: (0, c, 0)),
                          pl.BlockSpec((fused_tc, 1), lambda c: (c, 0)),
                          pl.BlockSpec((fused_tc, 1), lambda c: (c, 0))],
                out_specs=(pl.BlockSpec((B, fused_tc, HW), lambda c: (0, c, 0)),
                           pl.BlockSpec((fused_tc, 1), lambda c: (c, 0)),
                           pl.BlockSpec((fused_tc, 1), lambda c: (c, 0)))),
            compiler_params=pltpu.CompilerParams(
                dimension_semantics=("parallel",),
                vmem_limit_bytes=budgets["limit"]),
        )(x3, w2, b2)
        batch_mean = mean2[:, 0]
        batch_var = var2[:, 0]
    else:
        # ---------------- Two-pass fallback (3N HBM bytes) --------------------
        block_budget = budgets["block"]
        tc = Ctot if Ctot <= 256 else 256          # full dim or multiple of 8
        cblocks = pl.cdiv(Ctot, tc)

        # Pass 1: only the input block is double-buffered -> 2x larger tile.
        thw1 = _pick_hw_tile(HW, 2 * tc * in_isz, block_budget)
        nhw1 = pl.cdiv(HW, thw1)
        red_steps = B * nhw1
        nsplit = 2 if red_steps >= 2 else 1        # keep both v7x TCs busy
        r_per_split = pl.cdiv(red_steps, nsplit)
        need_mask = (HW % thw1 != 0) or (red_steps % nsplit != 0)

        def x1_map(c, s, r):
            g = jnp.minimum(s * r_per_split + r, red_steps - 1)  # clamp overrun
            return (g // nhw1, c, g % nhw1)

        stats_kernel = functools.partial(
            _partial_stats_kernel, nhw=nhw1, red_steps=red_steps,
            r_per_split=r_per_split, hw=HW, thw=thw1, need_mask=need_mask)

        sums, sqs = pl.pallas_call(
            stats_kernel,
            out_shape=(jax.ShapeDtypeStruct((nsplit, Ctot, 1), jnp.float32),
                       jax.ShapeDtypeStruct((nsplit, Ctot, 1), jnp.float32)),
            grid_spec=pltpu.PrefetchScalarGridSpec(
                num_scalar_prefetch=0,
                grid=(cblocks, nsplit, r_per_split),
                in_specs=[pl.BlockSpec((1, tc, thw1), x1_map)],
                out_specs=(pl.BlockSpec((1, tc, 1), lambda c, s, r: (s, c, 0)),
                           pl.BlockSpec((1, tc, 1), lambda c, s, r: (s, c, 0)))),
            compiler_params=pltpu.CompilerParams(
                dimension_semantics=("parallel", "parallel", "arbitrary"),
                vmem_limit_bytes=budgets["limit"]),
        )(x3)

        # Pass 2: finalization fused in-kernel; tail stores auto-masked.
        thw2 = _pick_hw_tile(HW, 2 * tc * (in_isz + out_isz), block_budget)
        nhw2 = pl.cdiv(HW, thw2)
        norm_kernel = functools.partial(_normalize_kernel, eps=eps, inv_n=inv_n)

        y3 = pl.pallas_call(
            norm_kernel,
            out_shape=jax.ShapeDtypeStruct((B, Ctot, HW), x3.dtype),
            grid_spec=pltpu.PrefetchScalarGridSpec(
                num_scalar_prefetch=0,
                grid=(B, cblocks, nhw2),
                in_specs=[pl.BlockSpec((1, tc, thw2), lambda b, c, j: (b, c, j)),
                          pl.BlockSpec((nsplit, tc, 1), lambda b, c, j: (0, c, 0)),
                          pl.BlockSpec((nsplit, tc, 1), lambda b, c, j: (0, c, 0)),
                          pl.BlockSpec((tc, 1), lambda b, c, j: (c, 0)),
                          pl.BlockSpec((tc, 1), lambda b, c, j: (c, 0))],
                out_specs=pl.BlockSpec((1, tc, thw2), lambda b, c, j: (b, c, j))),
            compiler_params=pltpu.CompilerParams(
                dimension_semantics=("parallel", "parallel", "parallel"),
                vmem_limit_bytes=budgets["limit"]),
        )(x3, sums, sqs, w2, b2)

        # Batch stats for running-stat updates: tiny O(Ctot) glue, off the
        # critical path of pass 2.
        sum_tot = jnp.sum(sums, axis=0)[:, 0]
        sq_tot = jnp.sum(sqs, axis=0)[:, 0]
        batch_mean = sum_tot * inv_n
        batch_var = jnp.maximum(sq_tot * inv_n - batch_mean * batch_mean, 0.0)

    # Pure reshapes (no data movement): [B, Ctot, HW] -> NCHW -> group dim.
    y = y3.reshape(B, Ctot, H, W)
    if n_groups > 1 and keep_group_dim:
        y = y.reshape(B, n_groups, num_features, H, W)
    return y, batch_mean, batch_var


def update_running_stats(running_mean, running_var, batch_mean, batch_var,
                         n_elems, momentum=0.1):
    """Training-mode buffer update (PyTorch side effect, done in plain JAX).

    F.batch_norm updates running_var with the *unbiased* variance.
    Note: n_elems == 1 gives inf/NaN, matching PyTorch's failure mode.
    """
    unbiased_var = batch_var * (n_elems / (n_elems - 1.0))
    new_mean = (1.0 - momentum) * running_mean + momentum * batch_mean
    new_var = (1.0 - momentum) * running_var + momentum * unbiased_var
    return new_mean, new_var


# --------------------------------------------------------------------------
# Self-test
# --------------------------------------------------------------------------
def _reference(x, weight, bias, eps, n_groups, num_features):
    B, Ctot, H, W = x.shape
    w = weight.reshape(-1)
    b = bias.reshape(-1)
    mean = jnp.mean(x, axis=(0, 2, 3))
    var = jnp.var(x, axis=(0, 2, 3))        # biased
    y = ((x - mean[None, :, None, None])
         / jnp.sqrt(var + eps)[None, :, None, None]
         * w[None, :, None, None] + b[None, :, None, None])
    if n_groups > 1:
        y = y.reshape(B, n_groups, num_features, H, W)
    return y, mean, var


if __name__ == "__main__":
    key = jax.random.PRNGKey(0)
    eps = 1e-5
    momentum = 0.1

    def run_case(case_id, B, n_groups, num_features, H, W, tol=1e-4, **kw):
        Ctot = n_groups * num_features
        kx, kwgt, kb = jax.random.split(jax.random.fold_in(key, case_id), 3)
        x = jax.random.normal(kx, (B, Ctot, H, W), dtype=jnp.float32)
        weight = 1.0 + 0.1 * jax.random.normal(kwgt, (n_groups, num_features),
                                               dtype=jnp.float32)
        bias = 0.1 * jax.random.normal(kb, (n_groups, num_features),
                                       dtype=jnp.float32)
        y, bm, bv = param_batch_norm_2d(
            x, weight, bias, n_groups=n_groups, num_features=num_features,
            eps=eps, **kw)
        y = jax.block_until_ready(y)
        y_ref, m_ref, v_ref = _reference(x, weight, bias, eps, n_groups,
                                         num_features)
        assert y.shape == y_ref.shape, (y.shape, y_ref.shape)
        assert jnp.allclose(y, y_ref, atol=tol, rtol=tol)
        assert jnp.allclose(bm, m_ref, atol=tol, rtol=tol)
        assert jnp.allclose(bv, v_ref, atol=tol, rtol=tol)
        return bm, bv

    # Case 0: fused single-read path (default dispatch).
    bm0, bv0 = run_case(0, B=2, n_groups=2, num_features=4, H=16, W=16)
    # Case 1: fused path with a partial (out-of-bounds tail) channel block.
    run_case(1, B=2, n_groups=3, num_features=4, H=16, W=16, _force_fused_ctile=8)
    # Case 2: two-pass fallback, even reduction split, no masking needed.
    run_case(2, B=2, n_groups=2, num_features=4, H=16, W=16, force_two_pass=True)
    # Case 3: two-pass fallback with odd reduction steps (clamped split + mask),
    #         channel-block tail (Ctot=264 -> tc=256), and HW not a multiple of 128.
    run_case(3, B=3, n_groups=2, num_features=132, H=10, W=10, force_two_pass=True)

    # Running-stat buffer update (training mode, track_running_stats=True).
    Ctot0 = 2 * 4
    running_mean = jnp.zeros((Ctot0,), jnp.float32)
    running_var = jnp.ones((Ctot0,), jnp.float32)
    n_elems = 2 * 16 * 16
    running_mean, running_var = update_running_stats(
        running_mean, running_var, bm0, bv0, n_elems, momentum)
    jax.block_until_ready((running_mean, running_var))

    print("KERNEL_OK")
</pallas_src>

<mosaic_0001>
module attributes {stable_mosaic.version = 11 : i64} {
  func.func @_fused_bn_kernel(%arg0: i32, %arg1: memref<2x8x256xf32, #tpu.memory_space<vmem>>, %arg2: memref<8x1xf32, #tpu.memory_space<vmem>>, %arg3: memref<8x1xf32, #tpu.memory_space<vmem>>, %arg4: memref<2x8x256xf32, #tpu.memory_space<vmem>>, %arg5: memref<8x1xf32, #tpu.memory_space<vmem>>, %arg6: memref<8x1xf32, #tpu.memory_space<vmem>>) attributes {dimension_semantics = [#tpu.dimension_semantics<parallel>], iteration_bounds = array<i64: 1>, scalar_prefetch = 0 : i64, scratch_operands = 0 : i64, tpu.core_type = #tpu.core_type<tc>, window_params = [{transform_indices = @transform_0, window_bounds = array<i64: 2, 8, 256>}, {transform_indices = @transform_1, window_bounds = array<i64: 8, 1>}, {transform_indices = @transform_2, window_bounds = array<i64: 8, 1>}, {transform_indices = @transform_3, window_bounds = array<i64: 2, 8, 256>}, {transform_indices = @transform_4, window_bounds = array<i64: 8, 1>}, {transform_indices = @transform_5, window_bounds = array<i64: 8, 1>}]} {
    %c0 = arith.constant 0 : index
    %c0_0 = arith.constant 0 : index
    %c0_1 = arith.constant 0 : index
    %0 = vector.load %arg1[%c0, %c0_0, %c0_1] : memref<2x8x256xf32, #tpu.memory_space<vmem>>, vector<2x8x256xf32>
    %cst = arith.constant dense<0.000000e+00> : vector<8x256xf32>
    %1 = vector.multi_reduction <add>, %0, %cst [0] : vector<2x8x256xf32> to vector<8x256xf32>
    %cst_2 = arith.constant dense<0.000000e+00> : vector<8xf32>
    %2 = vector.multi_reduction <add>, %1, %cst_2 [1] : vector<8x256xf32> to vector<8xf32>
    %3 = vector.shape_cast %2 : vector<8xf32> to vector<8x1xf32>
    %cst_3 = arith.constant 0.001953125 : f32
    %4 = vector.broadcast %cst_3 : f32 to vector<8x1xf32>
    %5 = arith.mulf %3, %4 : vector<8x1xf32>
    %6 = vector.shape_cast %5 : vector<8x1xf32> to vector<1x8x1xf32>
    %7 = vector.broadcast %6 : vector<1x8x1xf32> to vector<2x8x256xf32>
    %8 = arith.subf %0, %7 : vector<2x8x256xf32>
    %9 = arith.mulf %8, %8 : vector<2x8x256xf32>
    %cst_4 = arith.constant dense<0.000000e+00> : vector<8x256xf32>
    %10 = vector.multi_reduction <add>, %9, %cst_4 [0] : vector<2x8x256xf32> to vector<8x256xf32>
    %cst_5 = arith.constant dense<0.000000e+00> : vector<8xf32>
    %11 = vector.multi_reduction <add>, %10, %cst_5 [1] : vector<8x256xf32> to vector<8xf32>
    %12 = vector.shape_cast %11 : vector<8xf32> to vector<8x1xf32>
    %cst_6 = arith.constant 0.001953125 : f32
    %13 = vector.broadcast %cst_6 : f32 to vector<8x1xf32>
    %14 = arith.mulf %12, %13 : vector<8x1xf32>
    %cst_7 = arith.constant 9.99999974E-6 : f32
    %15 = vector.broadcast %cst_7 : f32 to vector<8x1xf32>
    %16 = arith.addf %14, %15 : vector<8x1xf32>
    %17 = math.rsqrt %16 : vector<8x1xf32>
    %c0_8 = arith.constant 0 : index
    %c0_9 = arith.constant 0 : index
    %18 = vector.load %arg2[%c0_8, %c0_9] : memref<8x1xf32, #tpu.memory_space<vmem>>, vector<8x1xf32>
    %19 = arith.mulf %17, %18 : vector<8x1xf32>
    %20 = vector.shape_cast %19 : vector<8x1xf32> to vector<1x8x1xf32>
    %21 = vector.broadcast %20 : vector<1x8x1xf32> to vector<2x8x256xf32>
    %22 = arith.mulf %8, %21 : vector<2x8x256xf32>
    %c0_10 = arith.constant 0 : index
    %c0_11 = arith.constant 0 : index
    %23 = vector.load %arg3[%c0_10, %c0_11] : memref<8x1xf32, #tpu.memory_space<vmem>>, vector<8x1xf32>
    %24 = vector.shape_cast %23 : vector<8x1xf32> to vector<1x8x1xf32>
    %25 = vector.broadcast %24 : vector<1x8x1xf32> to vector<2x8x256xf32>
    %26 = arith.addf %22, %25 : vector<2x8x256xf32>
    %c0_12 = arith.constant 0 : index
    %c0_13 = arith.constant 0 : index
    %c0_14 = arith.constant 0 : index
    %27 = vector.load %arg4[%c0_12, %c0_13, %c0_14] : memref<2x8x256xf32, #tpu.memory_space<vmem>>, vector<2x8x256xf32>
    tpu.vector_store %arg4[%c0_12, %c0_13, %c0_14], %26 {strides = array<i32>} : memref<2x8x256xf32, #tpu.memory_space<vmem>>, vector<2x8x256xf32>,
    %c0_15 = arith.constant 0 : index
    %c0_16 = arith.constant 0 : index
    %28 = vector.load %arg5[%c0_15, %c0_16] : memref<8x1xf32, #tpu.memory_space<vmem>>, vector<8x1xf32>
    tpu.vector_store %arg5[%c0_15, %c0_16], %5 {strides = array<i32>} : memref<8x1xf32, #tpu.memory_space<vmem>>, vector<8x1xf32>,
    %c0_17 = arith.constant 0 : index
    %c0_18 = arith.constant 0 : index
    %29 = vector.load %arg6[%c0_17, %c0_18] : memref<8x1xf32, #tpu.memory_space<vmem>>, vector<8x1xf32>
    tpu.vector_store %arg6[%c0_17, %c0_18], %14 {strides = array<i32>} : memref<8x1xf32, #tpu.memory_space<vmem>>, vector<8x1xf32>,
    return
  }
  func.func @transform_0(%arg0: i32) -> (i32, i32, i32) {
    %c0_i32 = arith.constant 0 : i32
    %c0_i32_0 = arith.constant 0 : i32
    %c0_i32_1 = arith.constant 0 : i32
    return %c0_i32, %arg0, %c0_i32_0 : i32, i32, i32
  }
  func.func @transform_1(%arg0: i32) -> (i32, i32) {
    %c0_i32 = arith.constant 0 : i32
    %c0_i32_0 = arith.constant 0 : i32
    return %arg0, %c0_i32 : i32, i32
  }
  func.func @transform_2(%arg0: i32) -> (i32, i32) {
    %c0_i32 = arith.constant 0 : i32
    %c0_i32_0 = arith.constant 0 : i32
    return %arg0, %c0_i32 : i32, i32
  }
  func.func @transform_3(%arg0: i32) -> (i32, i32, i32) {
    %c0_i32 = arith.constant 0 : i32
    %c0_i32_0 = arith.constant 0 : i32
    %c0_i32_1 = arith.constant 0 : i32
    return %c0_i32, %arg0, %c0_i32_0 : i32, i32, i32
  }
  func.func @transform_4(%arg0: i32) -> (i32, i32) {
    %c0_i32 = arith.constant 0 : i32
    %c0_i32_0 = arith.constant 0 : i32
    return %arg0, %c0_i32 : i32, i32
  }
  func.func @transform_5(%arg0: i32) -> (i32, i32) {
    %c0_i32 = arith.constant 0 : i32
    %c0_i32_0 = arith.constant 0 : i32
    return %arg0, %c0_i32 : i32, i32
  }
}

</mosaic_0001>

<llo_original>
// kernel: tpu_custom_call.1
$region0: #{tpu_custom_call.1}
  #allocation0 [shape = 'u32[]', space=smem, size = 0x4, offset = 0x4, fixed_abs, tag = 'smem constant byte address 0x4 - core index']
  #allocation1 [shape = 'u32[144,128]{1,0:T(1,128)}', space=vmem, size = 0x12000, scoped, tag = 'internal scratch']
  %s0 = inlined_call_operand.hbm [shape: f32[2,8,256], index: 0, kind: input, shape index: {}]
  %s1 = inlined_call_operand.vmem [shape: f32[8,1], index: 1, kind: input, shape index: {}]
  %s2 = inlined_call_operand.vmem [shape: f32[8,1], index: 2, kind: input, shape index: {}]
  %s3 = inlined_call_operand.hbm [shape: f32[2,8,256], index: 3, kind: output, shape index: {0}]
  %s4 = inlined_call_operand.vmem [shape: f32[8,1], index: 4, kind: output, shape index: {1}]
  %s5 = inlined_call_operand.vmem [shape: f32[8,1], index: 5, kind: output, shape index: {2}]
  %6 = xla_tuple %s3, %s4, %s5
  %s7 = sld [smem:[#allocation0]]
  $region42: #{tpu_custom_call.1} parent=0
    _
  %s9 = ssub.s32 1, %s7
  %s10 = scalar_select 0, %s9, %s7
  $region1: #{tpu_custom_call.1} parent=0
    #allocation2 [shape = 'u8[16384]{0}', space=vmem, size = 0x4000, scoped, tag = 'input window, operand 0, single buffered']
    #allocation3 [shape = 's32[1]{0}', space=sflag, size = 0x4, scoped, tag = 'scoped memory for tpu_custom_call.1']
    #allocation4 [shape = 's32[1]{0}', space=sflag, size = 0x4, scoped, tag = 'scoped memory for tpu_custom_call.1']
    #allocation5 [shape = 'u8[16384]{0}', space=vmem, size = 0x4000, scoped, tag = 'output window, operand 0, single buffered']
    %11 = vsyncpa [#allocation3], 0
    %12 = vsyncpa [#allocation4], 0
    // Predicated region
    $region2: #{tpu_custom_call.1} parent=1 // pred_check
      _
    $region3: #{tpu_custom_call.1} parent=1 // pred_check_branch
      %14 = sbr.rel (0) target = $region5
    $region4: #{tpu_custom_call.1} parent=1 // pred_region
      %s16 = ssub.s32 512, 512
      %17 = vsyncadd [#allocation3], %s16
      %s18 = sshll.u32 [#allocation2], 4
      %s19 = int_to_ptr.vmem [resolvable:$true] %s18
      %24 = dma.hbm_to_vmem [thread:$0]  %s0, 512, %s19, [#allocation3], 256, 256, 16
    $region5: #{tpu_custom_call.1} parent=1 // pred_fallthru
      _
    // Predicated region
    $region6: #{tpu_custom_call.1} parent=1 // pred_check
      _
    $region7: #{tpu_custom_call.1} parent=1 // pred_check_branch
      %26 = sbr.rel (0) target = $region9
    $region8: #{tpu_custom_call.1} parent=1 // pred_region
      _
    $region9: #{tpu_custom_call.1} parent=1 // pred_fallthru
      _
    // Predicated region
    $region10: #{tpu_custom_call.1} parent=1 // pred_check
      _
    $region11: #{tpu_custom_call.1} parent=1 // pred_check_branch
      %28 = sbr.rel (0) target = $region13
    $region12: #{tpu_custom_call.1} parent=1 // pred_region
      _
    $region13: #{tpu_custom_call.1} parent=1 // pred_fallthru
      _
    // Predicated region
    $region14: #{tpu_custom_call.1} parent=1 // pred_check
      _
    $region15: #{tpu_custom_call.1} parent=1 // pred_check_branch
      %30 = sbr.rel (0) target = $region17
    $region16: #{tpu_custom_call.1} parent=1 // pred_region
      %31 = dma.done [#allocation3], 512
    $region17: #{tpu_custom_call.1} parent=1 // pred_fallthru
      _
    %v32 = vld [vmem:[#allocation2] sm:$0xff]
    %v33 = vld [vmem:[#allocation2 + $0x8] sm:$0xff]
    %v34 = vld [vmem:[#allocation2 + $0x10] sm:$0xff]
    %v35 = vld [vmem:[#allocation2 + $0x18] sm:$0xff]
    %v36 = vadd.f32 %v32, %v34
    %v37 = vadd.f32 %v33, %v35
    %v38 = vadd.f32 %v36, %v37
    %39 = vadd.xlane.f32.xlu0 %v38
    %v40 = vpop.xlane.xlu0 %39
    %v41 = vmul.f32 %v40, 0.001953125
    %v42 = vsub.f32 %v32, %v41
    %v43 = vsub.f32 %v33, %v41
    %v44 = vsub.f32 %v34, %v41
    %v45 = vsub.f32 %v35, %v41
    %v46 = vmul.f32 %v42, %v42
    %v47 = vmul.f32 %v43, %v43
    %v48 = vmul.f32 %v44, %v44
    %v49 = vmul.f32 %v45, %v45
    %v50 = vadd.f32 %v46, %v48
    %v51 = vadd.f32 %v47, %v49
    %v52 = vadd.f32 %v50, %v51
    %53 = vadd.xlane.f32.xlu0 %v52
    %v54 = vpop.xlane.xlu0 %53
    %v55 = vmul.f32 %v54, 0.001953125
    %v56 = vadd.f32 %v55, 1e-05
    %v57 = vrsqrt.pop %v56
    %v58 = vld [vmem:[%s1] sm:$0xff]
    %v59 = vmul.f32 %v57, %v58
    %61 = vset.pattern.permute.xlu0 0
    %62 = vperm.xlu0 %61, %v59
    %v63 = vpop.permute.xlu0 %62
    %v65 = vmul.f32 %v42, %v63
    %v66 = vmul.f32 %v43, %v63
    %v67 = vmul.f32 %v44, %v63
    %v68 = vmul.f32 %v45, %v63
    %v69 = vld [vmem:[%s2] sm:$0xff]
    %71 = vset.pattern.permute.xlu0 0
    %72 = vperm.xlu0 %71, %v69
    %v73 = vpop.permute.xlu0 %72
    %v75 = vadd.f32 %v65, %v73
    %v76 = vadd.f32 %v66, %v73
    %v77 = vadd.f32 %v67, %v73
    %v78 = vadd.f32 %v68, %v73
    %79 = vst [vmem:[#allocation5] sm:$0xff] %v75
    %80 = vst [vmem:[#allocation5 + $0x8] sm:$0xff] %v76
    %81 = vst [vmem:[#allocation5 + $0x10] sm:$0xff] %v77
    %82 = vst [vmem:[#allocation5 + $0x18] sm:$0xff] %v78
    %vm83 = vcmask 7168
    %84 = vst.msk [vmem:[%s4] sm:$0xff] %vm83, %v41
    %85 = vst.msk [vmem:[%s5] sm:$0xff] %vm83, %v55
    // Predicated region
    $region18: #{tpu_custom_call.1} parent=1 // pred_check
      _
    $region19: #{tpu_custom_call.1} parent=1 // pred_check_branch
      %87 = sbr.rel (0) target = $region21
    $region20: #{tpu_custom_call.1} parent=1 // pred_region
      %s89 = ssub.s32 512, 512
      %90 = vsyncadd [#allocation4], %s89
      %s91 = sshll.u32 [#allocation5], 4
      %s92 = int_to_ptr.vmem [resolvable:$true] %s91
      %97 = dma.vmem_to_hbm [thread:$0]  %s92, 512, %s3, [#allocation4], 256, 256, 16
    $region21: #{tpu_custom_call.1} parent=1 // pred_fallthru
      _
    // Predicated region
    $region22: #{tpu_custom_call.1} parent=1 // pred_check
      _
    $region23: #{tpu_custom_call.1} parent=1 // pred_check_branch
      %99 = sbr.rel (0) target = $region25
    $region24: #{tpu_custom_call.1} parent=1 // pred_region
      _
    $region25: #{tpu_custom_call.1} parent=1 // pred_fallthru
      _
    // Predicated region
    $region26: #{tpu_custom_call.1} parent=1 // pred_check
      _
    $region27: #{tpu_custom_call.1} parent=1 // pred_check_branch
      %101 = sbr.rel (0) target = $region29
    $region28: #{tpu_custom_call.1} parent=1 // pred_region
      _
    $region29: #{tpu_custom_call.1} parent=1 // pred_fallthru
      _
    // Predicated region
    $region30: #{tpu_custom_call.1} parent=1 // pred_check
      _
    $region31: #{tpu_custom_call.1} parent=1 // pred_check_branch
      %103 = sbr.rel (0) target = $region33
    $region32: #{tpu_custom_call.1} parent=1 // pred_region
      %104 = dma.done [#allocation4], 512
    $region33: #{tpu_custom_call.1} parent=1 // pred_fallthru
      _
    // Predicated region
    $region34: #{tpu_custom_call.1} parent=1 // pred_check
      _
    $region35: #{tpu_custom_call.1} parent=1 // pred_check_branch
      %106 = sbr.rel (0) target = $region37
    $region36: #{tpu_custom_call.1} parent=1 // pred_region
      _
    $region37: #{tpu_custom_call.1} parent=1 // pred_fallthru
      _
    // Predicated region
    $region38: #{tpu_custom_call.1} parent=1 // pred_check
      _
    $region39: #{tpu_custom_call.1} parent=1 // pred_check_branch
      %108 = sbr.rel (0) target = $region41
    $region40: #{tpu_custom_call.1} parent=1 // pred_region
      _
    $region41: #{tpu_custom_call.1} parent=1 // pred_fallthru
      _
    %109 = vsyncpa [#allocation3], 1
    %110 = vsyncpa [#allocation4], 1

</llo_original>
